<compile_context>
chip_gen: v5e
topology: v5e:2x2
jax: 0.10.0
libtpu: 0.0.40
codegen_flags: <defaults>
</compile_context>

<pallas_src>
import functools

import jax
import jax.numpy as jnp
from jax.experimental import pallas as pl
from jax.experimental.pallas import tpu as pltpu


def _round_up(x, m):
    return ((x + m - 1) // m) * m


def _focal_loss_kernel(*refs, gamma, reduction, has_weight, n_valid, tile_n):
    if has_weight:
        logits_ref, target_ref, weight_ref = refs[0], refs[1], refs[2]
        out_refs = refs[3:]
    else:
        logits_ref, target_ref = refs[0], refs[1]
        weight_ref = None
        out_refs = refs[2:]

    logits = logits_ref[...].astype(jnp.float32)              # (tile_n, C)
    tgt = target_ref[...]                                      # (tile_n, 1) int32
    tn, c = logits.shape

    # target predicate (no float one-hot kept around longer than needed)
    col = jax.lax.broadcasted_iota(jnp.int32, (tn, c), 1)
    is_tgt = col == tgt                                        # (tile_n, C) bool

    ones_col = jnp.ones((c, 1), jnp.float32)

    # --- row reductions on the MXU (f32: exact, frees the XLU) ---
    # target logit: rowsum(where(is_tgt, logits, 0)) as a matmul with a ones column
    out_target = jnp.dot(jnp.where(is_tgt, logits, 0.0), ones_col,
                         preferred_element_type=jnp.float32)   # (tile_n, 1)

    # stable log-softmax at the target class; sum(exp) also on the MXU
    m = jnp.max(logits, axis=-1, keepdims=True)                # only XLU cross-lane reduce left
    sum_exp = jnp.dot(jnp.exp(logits - m), ones_col,
                      preferred_element_type=jnp.float32)      # (tile_n, 1)
    log_p_t = out_target - (jnp.log(sum_exp) + m)              # (tile_n, 1)

    # focal weight = (1 - sigmoid(x)) ** gamma ;  1 - sigmoid(x) == 1 / (1 + exp(x))
    one_minus_p = 1.0 / (1.0 + jnp.exp(out_target))
    g = float(gamma)
    if g == 0.0:
        fw = jnp.ones_like(one_minus_p)                        # module default; avoids 0**0 NaN
    elif g.is_integer() and 1.0 <= g <= 8.0:
        fw = one_minus_p
        for _ in range(int(g) - 1):
            fw = fw * one_minus_p                              # repeated multiply, no log/exp
    else:
        fw = jnp.power(one_minus_p, jnp.float32(g))

    # weighted cross entropy, reduction='none': ce[i] = -weight[target[i]] * log_p_t[i]
    if has_weight:
        w_col = weight_ref[...]                                # (C, 1) f32, VMEM-resident
        w_t = jnp.dot(is_tgt.astype(jnp.float32), w_col,
                      preferred_element_type=jnp.float32)      # MXU class-weight gather
        ce = -w_t * log_p_t
    else:
        ce = -log_p_t

    fl = fw * ce                                               # (tile_n, 1)

    # mask rows past the end of the batch: the last (ragged) tile reads garbage there,
    # which may be inf/NaN, so always select (never multiply-by-mask).
    i = pl.program_id(0)
    row = jax.lax.broadcasted_iota(jnp.int32, (tn, 1), 0)
    valid = (i * tile_n + row) < n_valid

    if reduction == 'none':
        # TODO(synk): a lane-dense (tile_n//128, 128) relayout of this column would avoid
        # masked lane-width-1 stores, but needs a sublane->lane reshape in-kernel; output
        # bytes are only ~1/C of the input traffic so it is left as-is.
        (out_ref,) = out_refs
        out_ref[...] = jnp.where(valid, fl, 0.0)
    else:
        (part_ref,) = out_refs                                 # (8, 128) slab per tile
        s_fl = jnp.sum(jnp.where(valid, fl, 0.0), axis=0, keepdims=True)   # (1, 1)
        s_fw = jnp.sum(jnp.where(valid, fw, 0.0), axis=0, keepdims=True)   # (1, 1)
        # pack both partials into one aligned slab: fl at [0,0], fw at [0,64], zeros elsewhere
        prow = jax.lax.broadcasted_iota(jnp.int32, part_ref.shape, 0)
        plane = jax.lax.broadcasted_iota(jnp.int32, part_ref.shape, 1)
        slab = (jnp.where((prow == 0) & (plane == 0), s_fl, 0.0)
                + jnp.where((prow == 0) & (plane == 64), s_fw, 0.0))
        part_ref[...] = slab


def focal_loss(output, target, *, gamma=0.0, weight=None, reduction='mean', tile_n=None):
    """Pallas TPU focal loss.  output: [N, C] float, target: [N] int."""
    if reduction not in ('mean', 'sum', 'none'):
        raise ValueError(f"unsupported reduction: {reduction!r}")
    n, c = output.shape
    has_weight = weight is not None
    itemsize = jnp.dtype(output.dtype).itemsize

    # Batch tile from a pure VMEM byte budget: ~4 MiB of f32 working set per logits block.
    # Double-buffered native-dtype input blocks (<= 8 MiB) plus a handful of f32
    # temporaries stay well under the 40 MiB limit below on v5e/v6e/v7x.
    if tile_n is None:
        f32_row_bytes = max(c * 4, 1)
        tile_n = max(8, (4 * 1024 * 1024) // f32_row_bytes)
    tile_n = int(max(8, min(int(tile_n), _round_up(n, 8))))
    tile_n = _round_up(tile_n, 8)
    num_tiles = (n + tile_n - 1) // tile_n          # ragged last tile; no jnp.pad of logits

    target2d = target.reshape(n, 1).astype(jnp.int32)

    kernel = functools.partial(
        _focal_loss_kernel, gamma=float(gamma), reduction=reduction,
        has_weight=has_weight, n_valid=n, tile_n=tile_n)

    in_specs = [
        pl.BlockSpec((tile_n, c), lambda i: (i, 0)),          # logits tile (native dtype)
        pl.BlockSpec((tile_n, 1), lambda i: (i, 0)),          # target tile
    ]
    args = [output, target2d]
    if has_weight:
        in_specs.append(pl.BlockSpec((c, 1), lambda i: (0, 0)))   # class weights column, resident
        args.append(weight.reshape(c, 1).astype(jnp.float32))

    if reduction == 'none':
        out_shape = jax.ShapeDtypeStruct((n, 1), jnp.float32)
        out_specs = pl.BlockSpec((tile_n, 1), lambda i: (i, 0))
        out_bytes = n * 4
    else:
        # one packed (8,128) slab of partial sums per tile
        out_shape = jax.ShapeDtypeStruct((num_tiles * 8, 128), jnp.float32)
        out_specs = pl.BlockSpec((8, 128), lambda i: (i, 0))
        out_bytes = num_tiles * 8 * 128 * 4

    cost = pl.CostEstimate(
        flops=int(8 * n * c),
        transcendentals=int(n * c + 4 * n),
        bytes_accessed=int(n * c * itemsize + n * 4 + out_bytes))

    result = pl.pallas_call(
        kernel,
        grid=(num_tiles,),
        in_specs=in_specs,
        out_specs=out_specs,
        out_shape=out_shape,
        compiler_params=pltpu.CompilerParams(
            dimension_semantics=("parallel",),        # megacore sharding on v7x; no-op v5e/v6e
            vmem_limit_bytes=40 * 1024 * 1024),
        cost_estimate=cost,
    )(*args)

    if reduction == 'none':
        return result[:n, 0]
    # dense (non-strided) reductions; exact because each slab is zero except [0,0]/[0,64]
    sum_fl = jnp.sum(result[:, :64])
    if reduction == 'sum':
        return sum_fl
    sum_fw = jnp.sum(result[:, 64:])
    return sum_fl / sum_fw                            # == (fl / fw.sum()).sum()


def _focal_loss_ref(output, target, *, gamma=0.0, weight=None, reduction='mean'):
    """Pure-JAX reference mirroring the PyTorch module."""
    n, c = output.shape
    rows = jnp.arange(n)
    out_target = output[rows, target].astype(jnp.float32)
    probs = jax.nn.sigmoid(out_target)
    fw = jnp.power(1.0 - probs, gamma)
    logp = jax.nn.log_softmax(output.astype(jnp.float32), axis=-1)
    w = jnp.ones((c,), jnp.float32) if weight is None else weight.astype(jnp.float32)
    ce = -w[target] * logp[rows, target]
    fl = fw * ce
    if reduction == 'mean':
        return jnp.sum(fl / jnp.sum(fw))
    if reduction == 'sum':
        return jnp.sum(fl)
    return fl


if __name__ == "__main__":
    key = jax.random.PRNGKey(0)
    k1, k2, k3 = jax.random.split(key, 3)

    N, C = 20, 32                     # N not a multiple of the tile -> exercises the ragged tile
    logits = jax.random.normal(k1, (N, C), dtype=jnp.float32)
    target = jax.random.randint(k2, (N,), 0, C, dtype=jnp.int32)
    class_w = jax.random.uniform(k3, (C,), minval=0.5, maxval=1.5, dtype=jnp.float32)

    checks = [
        dict(gamma=0.0, weight=None, reduction='mean'),        # module defaults
        dict(gamma=2.0, weight=None, reduction='mean'),
        dict(gamma=2.0, weight=class_w, reduction='sum'),
        dict(gamma=2.0, weight=class_w, reduction='none'),
    ]
    for cfg in checks:
        # small explicit tile -> multi-step grid + ragged/masked last tile
        got = jax.block_until_ready(focal_loss(logits, target, tile_n=8, **cfg))
        ref = _focal_loss_ref(logits, target, **cfg)
        assert jnp.allclose(got, ref, rtol=1e-4, atol=1e-5), (cfg, got, ref)

    # also exercise the auto tile heuristic (single-tile path, tile_n > N)
    got = jax.block_until_ready(focal_loss(logits, target, gamma=2.0, reduction='mean'))
    ref = _focal_loss_ref(logits, target, gamma=2.0, reduction='mean')
    assert jnp.allclose(got, ref, rtol=1e-4, atol=1e-5), (got, ref)

    print("KERNEL_OK")
</pallas_src>

<mosaic_0001>
module attributes {stable_mosaic.version = 11 : i64} {
  func.func @_focal_loss_kernel(%arg0: i32, %arg1: memref<8x32xf32, #tpu.memory_space<vmem>>, %arg2: memref<8x1xi32, #tpu.memory_space<vmem>>, %arg3: memref<8x128xf32, #tpu.memory_space<vmem>>) attributes {dimension_semantics = [#tpu.dimension_semantics<parallel>], iteration_bounds = array<i64: 3>, scalar_prefetch = 0 : i64, scratch_operands = 0 : i64, tpu.core_type = #tpu.core_type<tc>, window_params = [{transform_indices = @transform_0, window_bounds = array<i64: 8, 32>}, {transform_indices = @transform_1, window_bounds = array<i64: 8, 1>}, {transform_indices = @transform_2, window_bounds = array<i64: 8, 128>}]} {
    %c0 = arith.constant 0 : index
    %c0_0 = arith.constant 0 : index
    %0 = vector.load %arg1[%c0, %c0_0] : memref<8x32xf32, #tpu.memory_space<vmem>>, vector<8x32xf32>
    %c0_1 = arith.constant 0 : index
    %c0_2 = arith.constant 0 : index
    %1 = vector.load %arg2[%c0_1, %c0_2] : memref<8x1xi32, #tpu.memory_space<vmem>>, vector<8x1xi32>
    %2 = tpu.iota {dimensions = array<i32: 1>} : vector<8x32xi32>
    %3 = vector.broadcast %1 : vector<8x1xi32> to vector<8x32xi32>
    %4 = arith.cmpi eq, %2, %3 : vector<8x32xi32>
    %cst = arith.constant 1.000000e+00 : f32
    %5 = vector.broadcast %cst : f32 to vector<32x1xf32>
    %cst_3 = arith.constant 0.000000e+00 : f32
    %6 = vector.broadcast %cst_3 : f32 to vector<8x32xf32>
    %7 = arith.select %4, %0, %6 : vector<8x32xi1>, vector<8x32xf32>
    %cst_4 = arith.constant dense<0.000000e+00> : vector<8x1xf32>
    %8 = tpu.matmul %7, %5, %cst_4 {dimension_numbers = #tpu.dot_dimension_numbers<[1], [0], [0], [1], [0, 0, 1, 1], [], []>} : vector<8x32xf32>, vector<32x1xf32>, vector<8x1xf32> -> vector<8x1xf32>
    %cst_5 = arith.constant dense<0xFF800000> : vector<8xf32>
    %9 = vector.multi_reduction <maximumf>, %0, %cst_5 [1] : vector<8x32xf32> to vector<8xf32>
    %10 = vector.shape_cast %9 : vector<8xf32> to vector<8x1xf32>
    %11 = vector.broadcast %10 : vector<8x1xf32> to vector<8x32xf32>
    %12 = arith.subf %0, %11 : vector<8x32xf32>
    %13 = math.exp %12 : vector<8x32xf32>
    %cst_6 = arith.constant dense<0.000000e+00> : vector<8x1xf32>
    %14 = tpu.matmul %13, %5, %cst_6 {dimension_numbers = #tpu.dot_dimension_numbers<[1], [0], [0], [1], [0, 0, 1, 1], [], []>} : vector<8x32xf32>, vector<32x1xf32>, vector<8x1xf32> -> vector<8x1xf32>
    %15 = math.log %14 : vector<8x1xf32>
    %16 = arith.addf %15, %10 : vector<8x1xf32>
    %17 = arith.subf %8, %16 : vector<8x1xf32>
    %cst_7 = arith.constant 1.000000e+00 : f32
    %18 = vector.broadcast %cst_7 : f32 to vector<8x1xf32>
    %cst_8 = arith.constant 0.000000e+00 : f32
    %19 = vector.broadcast %cst_8 : f32 to vector<8x1xf32>
    %20 = arith.subf %19, %17 : vector<8x1xf32>
    %21 = arith.mulf %18, %20 : vector<8x1xf32>
    %22 = tpu.iota {dimensions = array<i32: 0>} : vector<8x1xi32>
    %c8_i32 = arith.constant 8 : i32
    %23 = arith.muli %arg0, %c8_i32 : i32
    %24 = vector.broadcast %23 : i32 to vector<8x1xi32>
    %25 = arith.addi %24, %22 : vector<8x1xi32>
    %c20_i32 = arith.constant 20 : i32
    %26 = vector.broadcast %c20_i32 : i32 to vector<8x1xi32>
    %27 = arith.cmpi slt, %25, %26 : vector<8x1xi32>
    %cst_9 = arith.constant 0.000000e+00 : f32
    %28 = vector.broadcast %cst_9 : f32 to vector<8x1xf32>
    %29 = arith.select %27, %21, %28 : vector<8x1xi1>, vector<8x1xf32>
    %cst_10 = arith.constant dense<0.000000e+00> : vector<1xf32>
    %30 = vector.multi_reduction <add>, %29, %cst_10 [0] : vector<8x1xf32> to vector<1xf32>
    %31 = vector.shape_cast %30 : vector<1xf32> to vector<1x1xf32>
    %cst_11 = arith.constant 0.000000e+00 : f32
    %32 = vector.broadcast %cst_11 : f32 to vector<8x1xf32>
    %33 = arith.select %27, %18, %32 : vector<8x1xi1>, vector<8x1xf32>
    %cst_12 = arith.constant dense<0.000000e+00> : vector<1xf32>
    %34 = vector.multi_reduction <add>, %33, %cst_12 [0] : vector<8x1xf32> to vector<1xf32>
    %35 = vector.shape_cast %34 : vector<1xf32> to vector<1x1xf32>
    %36 = tpu.iota {dimensions = array<i32: 0>} : vector<8x128xi32>
    %37 = tpu.iota {dimensions = array<i32: 1>} : vector<8x128xi32>
    %c0_i32 = arith.constant 0 : i32
    %38 = vector.broadcast %c0_i32 : i32 to vector<8x128xi32>
    %39 = arith.cmpi eq, %36, %38 : vector<8x128xi32>
    %c0_i32_13 = arith.constant 0 : i32
    %40 = vector.broadcast %c0_i32_13 : i32 to vector<8x128xi32>
    %41 = arith.cmpi eq, %37, %40 : vector<8x128xi32>
    %42 = arith.andi %39, %41 : vector<8x128xi1>
    %cst_14 = arith.constant 0.000000e+00 : f32
    %43 = vector.shape_cast %31 : vector<1x1xf32> to vector<1x1xf32>
    %44 = vector.broadcast %43 : vector<1x1xf32> to vector<8x128xf32>
    %45 = vector.broadcast %cst_14 : f32 to vector<8x128xf32>
    %46 = arith.select %42, %44, %45 : vector<8x128xi1>, vector<8x128xf32>
    %c0_i32_15 = arith.constant 0 : i32
    %47 = vector.broadcast %c0_i32_15 : i32 to vector<8x128xi32>
    %48 = arith.cmpi eq, %36, %47 : vector<8x128xi32>
    %c64_i32 = arith.constant 64 : i32
    %49 = vector.broadcast %c64_i32 : i32 to vector<8x128xi32>
    %50 = arith.cmpi eq, %37, %49 : vector<8x128xi32>
    %51 = arith.andi %48, %50 : vector<8x128xi1>
    %cst_16 = arith.constant 0.000000e+00 : f32
    %52 = vector.shape_cast %35 : vector<1x1xf32> to vector<1x1xf32>
    %53 = vector.broadcast %52 : vector<1x1xf32> to vector<8x128xf32>
    %54 = vector.broadcast %cst_16 : f32 to vector<8x128xf32>
    %55 = arith.select %51, %53, %54 : vector<8x128xi1>, vector<8x128xf32>
    %56 = arith.addf %46, %55 : vector<8x128xf32>
    %c0_17 = arith.constant 0 : index
    %c0_18 = arith.constant 0 : index
    %57 = vector.load %arg3[%c0_17, %c0_18] : memref<8x128xf32, #tpu.memory_space<vmem>>, vector<8x128xf32>
    tpu.vector_store %arg3[%c0_17, %c0_18], %56 {strides = array<i32>} : memref<8x128xf32, #tpu.memory_space<vmem>>, vector<8x128xf32>,
    return
  }
  func.func @transform_0(%arg0: i32) -> (i32, i32) {
    %c0_i32 = arith.constant 0 : i32
    %c0_i32_0 = arith.constant 0 : i32
    return %arg0, %c0_i32 : i32, i32
  }
  func.func @transform_1(%arg0: i32) -> (i32, i32) {
    %c0_i32 = arith.constant 0 : i32
    %c0_i32_0 = arith.constant 0 : i32
    return %arg0, %c0_i32 : i32, i32
  }
  func.func @transform_2(%arg0: i32) -> (i32, i32) {
    %c0_i32 = arith.constant 0 : i32
    %c0_i32_0 = arith.constant 0 : i32
    return %arg0, %c0_i32 : i32, i32
  }
}

</mosaic_0001>

<llo_original>
// kernel: tpu_custom_call.1
$region0: #{tpu_custom_call.1}
  #allocation0 [shape = 'u32[]', space=smem, size = 0x4, offset = 0x4, fixed_abs, tag = 'smem constant byte address 0x4 - core index']
  #allocation1 [shape = 'u32[72,128]{1,0:T(1,128)}', space=vmem, size = 0x9000, scoped, tag = 'internal scratch']
  %s0 = inlined_call_operand.vmem [shape: f32[20,32], index: 0, kind: input, shape index: {}]
  %s1 = inlined_call_operand.vmem [shape: s32[20,1], index: 1, kind: input, shape index: {}]
  %s2 = inlined_call_operand.hbm [shape: f32[24,128], index: 2, kind: output, shape index: {}]
  %s3 = sld [smem:[#allocation0]]
  $region41: #{tpu_custom_call.1} parent=0
    _
  %s5 = ssub.s32 1, %s3
  %s6 = scalar_select 0, %s5, %s3
  $region1: #{tpu_custom_call.1} parent=0
    #allocation2 [shape = 'u8[8192]{0}', space=vmem, size = 0x2000, scoped, tag = 'output window, operand 0']
    #allocation3 [shape = 's32[2]{0}', space=sflag, size = 0x8, scoped, tag = 'scoped memory for tpu_custom_call.1']
    %7 = vsyncpa [#allocation3], 0
    %s8 = scalar_lea.sflag [#allocation3], 1
    %9 = vsyncpa %s8, 0
    loop: start=0, step=1, limit=5
    $region2: #{tpu_custom_call.1} parent=1 // loop_pre_header
      _
    $region3: #{tpu_custom_call.1} parent=1 // loop_header
      %s11 = sphi 0, %s15
      %p12 = scmp.ge.s32.totalorder %s11, 5
      %s21 = sphi 0, %s23
      %s24 = sphi 0, %s21
      %s25 = sphi 0, %s24
      %s41 = sphi 0, %s25
      %s47 = sphi 0, %s49
      %s50 = sphi 0, %s47
      %s51 = sphi 0, %s50
      %s67 = sphi 0, %s51
      %s73 = sphi 0, %s75
      %s76 = sphi 0, %s73
      %s77 = sphi 0, %s76
      %s93 = sphi 0, %s77
    $region4: #{tpu_custom_call.1} parent=1 // loop_header_branch
      %14 = sbr.rel (%p12) target = $region8
    $region5: #{tpu_custom_call.1} parent=1 // loop_body
      %s16 = ssub.s32 %s11, 1
      %s17 = ssub.s32 %s11, 2
      %s18 = sadd.s32 %s11, 1
      %s19 = ssub.s32 %s11, %s18
      %p20 = scmp.eq.s32.totalorder %s19, 0
      %s22 = sadd.s32 %s21, 1
      %s23 = scalar_select %p20, %s21, %s22
      %p26 = pneg %p20
      %p27 = scmp.eq.s32.totalorder %s11, 2
      %p28 = por %p26, %p27
      %p29 = scmp.ne.s32.totalorder %s21, %s24
      %p30 = scmp.eq.s32.totalorder %s11, 0
      %p31 = por %p29, %p30
      %p32 = scmp.ne.s32.totalorder %s21, %s24
      %p33 = scmp.eq.s32.totalorder %s16, 2
      %p34 = por %p32, %p33
      %p35 = scmp.ne.s32.totalorder %s24, %s25
      %p36 = scmp.eq.s32.totalorder %s16, 0
      %p37 = por %p35, %p36
      %p38 = scmp.ne.s32.totalorder %s24, %s25
      %p39 = scmp.eq.s32.totalorder %s17, 2
      %p40 = por %p38, %p39
      %p42 = scmp.ne.s32.totalorder %s25, %s41
      %p43 = scmp.eq.s32.totalorder %s17, 0
      %p44 = por %p42, %p43
      %s45 = ssub.s32 %s11, %s18
      %p46 = scmp.eq.s32.totalorder %s45, 0
      %s48 = sadd.s32 %s47, 1
      %s49 = scalar_select %p46, %s47, %s48
      %p52 = pneg %p46
      %p53 = scmp.eq.s32.totalorder %s11, 2
      %p54 = por %p52, %p53
      %p55 = scmp.ne.s32.totalorder %s47, %s50
      %p56 = scmp.eq.s32.totalorder %s11, 0
      %p57 = por %p55, %p56
      %p58 = scmp.ne.s32.totalorder %s47, %s50
      %p59 = scmp.eq.s32.totalorder %s16, 2
      %p60 = por %p58, %p59
      %p61 = scmp.ne.s32.totalorder %s50, %s51
      %p62 = scmp.eq.s32.totalorder %s16, 0
      %p63 = por %p61, %p62
      %p64 = scmp.ne.s32.totalorder %s50, %s51
      %p65 = scmp.eq.s32.totalorder %s17, 2
      %p66 = por %p64, %p65
      %p68 = scmp.ne.s32.totalorder %s51, %s67
      %p69 = scmp.eq.s32.totalorder %s17, 0
      %p70 = por %p68, %p69
      %s71 = ssub.s32 %s11, %s18
      %p72 = scmp.eq.s32.totalorder %s71, 0
      %s74 = sadd.s32 %s73, 1
      %s75 = scalar_select %p72, %s73, %s74
      %p78 = pneg %p72
      %p79 = scmp.eq.s32.totalorder %s11, 2
      %p80 = por %p78, %p79
      %p81 = scmp.ne.s32.totalorder %s73, %s76
      %p82 = scmp.eq.s32.totalorder %s11, 0
      %p83 = por %p81, %p82
      %p84 = scmp.ne.s32.totalorder %s73, %s76
      %p85 = scmp.eq.s32.totalorder %s16, 2
      %p86 = por %p84, %p85
      %p87 = scmp.ne.s32.totalorder %s76, %s77
      %p88 = scmp.eq.s32.totalorder %s16, 0
      %p89 = por %p87, %p88
      %p90 = scmp.ne.s32.totalorder %s76, %s77
      %p91 = scmp.eq.s32.totalorder %s17, 2
      %p92 = por %p90, %p91
      %p94 = scmp.ne.s32.totalorder %s77, %s93
      %p95 = scmp.eq.s32.totalorder %s17, 0
      %p96 = por %p94, %p95
      %p97 = scmp.le.s32.totalorder 1, %s11
      %p98 = scmp.lt.s32.totalorder %s11, 4
      %p99 = pnand %p97, %p98
      %p100 = pneg %p99
      // Predicated region
      $region9: #{tpu_custom_call.1} parent=5 // pred_check
        _
      $region10: #{tpu_custom_call.1} parent=5 // pred_check_branch
        %102 = sbr.rel (%p99) target = $region12
      $region11: #{tpu_custom_call.1} parent=5 // pred_region
        %s103 = ssub.s32 %s11, 1
      $region12: #{tpu_custom_call.1} parent=5 // pred_fallthru
        _
      %p104 = scmp.lt.s32.totalorder %s11, 3
      // Predicated region
      $region13: #{tpu_custom_call.1} parent=5 // pred_check
        %p105 = pneg %p104
      $region14: #{tpu_custom_call.1} parent=5 // pred_check_branch
        %107 = sbr.rel (%p105) target = $region16
      $region15: #{tpu_custom_call.1} parent=5 // pred_region
        // Predicated region
        $region17: #{tpu_custom_call.1} parent=15 // pred_check
          %p108 = pneg %p31
        $region18: #{tpu_custom_call.1} parent=15 // pred_check_branch
          %110 = sbr.rel (%p108) target = $region20
        $region19: #{tpu_custom_call.1} parent=15 // pred_region
          %p111 = scmp.lt.s32.totalorder %s11, 2
          %s112 = scalar_select %p111, %s11, 2
          %s113 = smul.addr %s112, 8
          %s114 = scalar_lea.vmem %s0, %s113
        $region20: #{tpu_custom_call.1} parent=15 // pred_fallthru
          _
        // Predicated region
        $region21: #{tpu_custom_call.1} parent=15 // pred_check
          %p115 = pneg %p57
        $region22: #{tpu_custom_call.1} parent=15 // pred_check_branch
          %117 = sbr.rel (%p115) target = $region24
        $region23: #{tpu_custom_call.1} parent=15 // pred_region
          %p118 = scmp.lt.s32.totalorder %s11, 2
          %s119 = scalar_select %p118, %s11, 2
          %s120 = smul.addr %s119, 8
          %s121 = scalar_lea.vmem %s1, %s120
        $region24: #{tpu_custom_call.1} parent=15 // pred_fallthru
          _
      $region16: #{tpu_custom_call.1} parent=5 // pred_fallthru
        _
      %p122 = scmp.le.s32.totalorder 1, %s11
      %p123 = scmp.lt.s32.totalorder %s11, 4
      %p124 = pnand %p122, %p123
      %p125 = pneg %p124
      // Predicated region
      $region25: #{tpu_custom_call.1} parent=5 // pred_check
        _
      $region26: #{tpu_custom_call.1} parent=5 // pred_check_branch
        %127 = sbr.rel (%p124) target = $region28
      $region27: #{tpu_custom_call.1} parent=5 // pred_region
        %s128 = ssub.s32 %s11, 1
        %p129 = scmp.lt.s32.totalorder %s16, 2
        %s130 = scalar_select %p129, %s16, 2
        %s131 = smul.addr %s130, 8
        %s132 = scalar_lea.vmem %s0, %s131
        %p133 = pneg %p37
        %p134 = pneg %p34
        %p135 = scmp.lt.s32.totalorder %s16, 2
        %s136 = scalar_select %p135, %s16, 2
        %s137 = smul.addr %s136, 8
        %s138 = scalar_lea.vmem %s1, %s137
        %p139 = pneg %p63
        %p140 = pneg %p60
        %p141 = pneg %p89
        %p142 = pneg %p86
        %s143 = sand.u32 %s76, 1
        %s144 = scalar_lea.sflag [#allocation3], %s143
        %s145 = sand.u32 %s76, 1
        %s146 = smul.addr %s145, 8
        %s147 = scalar_lea.vmem [#allocation2], %s146
        %p148 = scmp.lt.s32.totalorder %s16, 2
        %s149 = scalar_select %p148, %s16, 2
        %s150 = smul.addr %s149, 8
        %s151 = scalar_lea.vmem %s0, %s150
        %p152 = scmp.lt.s32.totalorder %s16, 2
        %s153 = scalar_select %p152, %s16, 2
        %s154 = smul.addr %s153, 8
        %s155 = scalar_lea.vmem %s1, %s154
        %v156 = vld [vmem:[%s151] sm:$0xff]
        %v157 = vld [vmem:[%s155] sm:$0xff]
        %v158 = vlaneseq
        %v159 = vand.u32 %v158, 127
        %160 = vset.pattern.permute.xlu0 0
        %161 = vperm.xlu0 %160, %v157
        %v162 = vpop.permute.xlu0 %161
        %vm163 = vcmp.eq.s32.totalorder %v159, %v162
        %v164 = vsel %vm163, %v156, 0.0
        %vm165 = vcmask 261120
        %v167 = vsel %vm165, %v164, 0
        %169 = vmatpush.msra.mxu0 0.0
        %170 = vmatpush.msra.mxu0 0.0
        %171 = vmatpush.msra.mxu0 0.0
        %172 = vmatpush.msra.mxu0 0.0
        %173 = vmatpush.msra.mxu0 0.0
        %174 = vmatpush.msra.mxu0 0.0
        %175 = vmatpush.msra.mxu0 0.0
        %176 = vmatpush.msra.mxu0 0.0
        %177 = vmatpush.msra.mxu0 0.0
        %178 = vmatpush.msra.mxu0 0.0
        %179 = vmatpush.msra.mxu0 0.0
        %180 = vmatpush.msra.mxu0 0.0
        %181 = vmatpush.msra.mxu0 1.0
        %182 = vmatpush.msra.mxu0 1.0
        %183 = vmatpush.msra.mxu0 1.0
        %184 = vmatpush.msra.mxu0 1.0
        %185 = vmatmul.f32.gmra.mxu0 %v167
        %v186 = vpop.f32.mrf.mxu0
        %v187 = vadd.f32 0.0, %v186
        %188 = vdwg.mxu0
        %v189 = vsel %vm165, %v156, -inf
        %190 = vmax.xlane.f32.xlu0 %v189
        %v191 = vpop.xlane.xlu0 %190
        %v192 = vsub.f32 %v156, %v191
        %v193 = vmul.f32 %v192, 1.442695
        %v194 = vpow.pop %v193
        %v196 = vsel %vm165, %v194, 0
        %198 = vmatpush.msra.mxu0 0.0
        %199 = vmatpush.msra.mxu0 0.0
        %200 = vmatpush.msra.mxu0 0.0
        %201 = vmatpush.msra.mxu0 0.0
        %202 = vmatpush.msra.mxu0 0.0
        %203 = vmatpush.msra.mxu0 0.0
        %204 = vmatpush.msra.mxu0 0.0
        %205 = vmatpush.msra.mxu0 0.0
        %206 = vmatpush.msra.mxu0 0.0
        %207 = vmatpush.msra.mxu0 0.0
        %208 = vmatpush.msra.mxu0 0.0
        %209 = vmatpush.msra.mxu0 0.0
        %210 = vmatpush.msra.mxu0 1.0
        %211 = vmatpush.msra.mxu0 1.0
        %212 = vmatpush.msra.mxu0 1.0
        %213 = vmatpush.msra.mxu0 1.0
        %214 = vmatmul.f32.gmra.mxu0 %v196
        %v215 = vpop.f32.mrf.mxu0
        %v216 = vadd.f32 0.0, %v215
        %217 = vdwg.mxu0
        %v218 = vlog2.pop %v216
        %v219 = vmul.f32 %v218, 0.6931472
        %v220 = vadd.f32 %v219, %v191
        %v221 = vsub.f32 %v187, %v220
        %v222 = vsub.f32 0.0, %v221
        %v223 = vlaneseq
        %v224 = vshrl.u32 %v223, 7
        %s225 = smul.u32 %s16, 8
        %v226 = vstv %s225
        %v227 = vadd.s32 %v226, %v224
        %vm228 = vcmp.lt.s32.totalorder %v227, 20
        %v229 = vsel %vm228, %v222, 0.0
        %vm230 = vcmask 7168
        %v231 = vsel %vm230, %v229, 0.0
        %v232 = vrot.slane %v231, 4
        %v233 = vadd.f32 %v231, %v232
        %v234 = vrot.slane %v233, 2
        %v235 = vadd.f32 %v233, %v234
        %v236 = vrot.slane %v235, 1
        %v237 = vadd.f32 %v235, %v236
        %v238 = vsel %vm228, 1.0, 0.0
        %v239 = vrot.slane %v238, 4
        %v240 = vadd.f32 %v238, %v239
        %v241 = vrot.slane %v240, 2
        %v242 = vadd.f32 %v240, %v241
        %v243 = vrot.slane %v242, 1
        %v244 = vadd.f32 %v242, %v243
        %vm245 = vcmp.eq.s32.totalorder %v224, 0
        %vm246 = vcmp.eq.s32.totalorder %v159, 0
        %vm247 = vmand %vm245, %vm246
        %249 = vset.pattern.permute.xlu0 0
        %250 = vperm.xlu0 %249, %v237
        %v251 = vpop.permute.xlu0 %250
        %v253 = vsel %vm247, %v251, 0.0
        %vm254 = vcmp.eq.s32.totalorder %v159, 64
        %vm255 = vmand %vm245, %vm254
        %v256 = vsel %vm255, %v244, 0.0
        %v257 = vadd.f32 %v253, %v256
        %258 = vst [vmem:[%s147] sm:$0xff] %v257
        %s259 = sand.u32 %s76, 1
        %s260 = scalar_lea.sflag [#allocation3], %s259
        %s261 = sand.u32 %s76, 1
        %s262 = smul.addr %s261, 8
        %s263 = scalar_lea.vmem [#allocation2], %s262
        // Predicated region
        $region29: #{tpu_custom_call.1} parent=27 // pred_check
          %p264 = pneg %p86
        $region30: #{tpu_custom_call.1} parent=27 // pred_check_branch
          %266 = sbr.rel (%p264) target = $region32
        $region31: #{tpu_custom_call.1} parent=27 // pred_region
          %268 = vsyncadd %s260, 0
          %s269 = smul.addr %s16, 8
          %s270 = scalar_lea.hbm %s2, %s269
          %s272 = sshll.u32 %s263, 4
          %s273 = int_to_ptr.vmem [resolvable:$true] %s272
          %s274 = sshll.u32 %s270, 4
          %s275 = int_to_ptr.hbm [resolvable:$true] %s274
          %277 = dma.vmem_to_hbm [thread:$0]  %s273, 128, %s275, %s260
        $region32: #{tpu_custom_call.1} parent=27 // pred_fallthru
          _
      $region28: #{tpu_custom_call.1} parent=5 // pred_fallthru
        _
      %p278 = scmp.le.s32.totalorder 2, %s11
      // Predicated region
      $region33: #{tpu_custom_call.1} parent=5 // pred_check
        %p279 = pneg %p278
      $region34: #{tpu_custom_call.1} parent=5 // pred_check_branch
        %281 = sbr.rel (%p279) target = $region36
      $region35: #{tpu_custom_call.1} parent=5 // pred_region
        %s282 = ssub.s32 %s11, 2
        // Predicated region
        $region37: #{tpu_custom_call.1} parent=35 // pred_check
          %p283 = pneg %p92
        $region38: #{tpu_custom_call.1} parent=35 // pred_check_branch
          %285 = sbr.rel (%p283) target = $region40
        $region39: #{tpu_custom_call.1} parent=35 // pred_region
          %s286 = sand.u32 %s77, 1
          %s287 = scalar_lea.sflag [#allocation3], %s286
          %s288 = sand.u32 %s77, 1
          %s289 = smul.addr %s288, 8
          %s290 = scalar_lea.vmem [#allocation2], %s289
          %292 = dma.done %s287, 128
        $region40: #{tpu_custom_call.1} parent=35 // pred_fallthru
          _
      $region36: #{tpu_custom_call.1} parent=5 // pred_fallthru
        _
    $region6: #{tpu_custom_call.1} parent=1 // loop_footer
      %s15 = sadd.s32 1, %s11
    $region7: #{tpu_custom_call.1} parent=1 // loop_footer_branch
      %10 = sbr.rel target = $region3
    $region8: #{tpu_custom_call.1} parent=1 // loop_exit
      _
    %293 = vsyncpa [#allocation3], 1
    %s294 = scalar_lea.sflag [#allocation3], 1
    %295 = vsyncpa %s294, 1

</llo_original>
